<compile_context>
chip_gen: v5e
topology: v5e:2x2
jax: 0.10.0
libtpu: 0.0.40
codegen_flags: <defaults>
</compile_context>

<pallas_src>
import functools

import jax
import jax.numpy as jnp
from jax.experimental import pallas as pl
from jax.experimental.pallas import tpu as pltpu


# ----------------------------------------------------------------------------
# Kernel
# ----------------------------------------------------------------------------
def _semantic_encoder_kernel(etypes, P,
                             ed_re_ref, ed_im_ref, r_re_ref, r_im_ref,
                             out_re_ref, out_im_ref):
    """Fused SemanticEncoder forward (single launch, all-VMEM).

    ed_re_ref / ed_im_ref : (E, P, Hc)  real / imag planes of edata
    r_re_ref  / r_im_ref  : (R, Hc)     raw relation rotation vectors
    out_*_ref             : (E, Hc)     mean-pooled rotated features
    `etypes` is the static python list (values index the DOUBLED 2R table,
    odd indices meaning "conjugate"); `P` is the metapath length.
    """
    Hc = r_re_ref.shape[1]

    # --- F.normalize(r_vec, p=2, dim=2): unit-modulus complex rotations ------
    r_re = r_re_ref[...]
    r_im = r_im_ref[...]
    denom = jnp.maximum(jnp.sqrt(r_re * r_re + r_im * r_im), 1e-12)  # clamp_min
    r_re = r_re / denom
    r_im = r_im / denom

    # --- backward recurrence building final_r_vec (static unroll) ------------
    # doubled index e: e even -> r_vec[e // 2] ; e odd -> conj(r_vec[e // 2])
    f_re = [None] * P
    f_im = [None] * P
    f_re[P - 1] = jnp.ones((1, Hc), jnp.float32)          # final_r_vec[-1] = 1+0j
    f_im[P - 1] = jnp.zeros((1, Hc), jnp.float32)
    for i in range(P - 2, -1, -1):
        e = etypes[i]
        if e is None:
            f_re[i] = f_re[i + 1]
            f_im[i] = f_im[i + 1]
        else:
            base = e // 2
            sgn = 1.0 if (e % 2 == 0) else -1.0
            rr = r_re[base:base + 1, :]                   # (1, Hc)
            ri = sgn * r_im[base:base + 1, :]
            f_re[i] = f_re[i + 1] * rr - f_im[i + 1] * ri
            f_im[i] = f_re[i + 1] * ri + f_im[i + 1] * rr

    # --- rotate every position & accumulate the mean (static unroll over P) --
    # Running accumulator keeps everything at (E, Hc): no 3-D temporaries, no
    # sublane concat of the rotation table, no cross-sublane reduction.
    acc_re = jnp.zeros(out_re_ref.shape, jnp.float32)
    acc_im = jnp.zeros(out_im_ref.shape, jnp.float32)
    for i in range(P):
        xr = ed_re_ref[:, i, :]                           # (E, Hc) static slab
        xi = ed_im_ref[:, i, :]
        if i == P - 1:
            # PyTorch only rotates positions 0..P-2; last one passes through
            # (its composed rotation is the identity anyway).
            acc_re = acc_re + xr
            acc_im = acc_im + xi
        else:
            acc_re = acc_re + (xr * f_re[i] - xi * f_im[i])
            acc_im = acc_im + (xr * f_im[i] + xi * f_re[i])

    inv_p = 1.0 / float(P)
    out_re_ref[...] = acc_re * inv_p
    out_im_ref[...] = acc_im * inv_p


# ----------------------------------------------------------------------------
# Wrapper
# ----------------------------------------------------------------------------
def semantic_encoder_forward(edata, r_vec, etypes):
    """edata: (E, P, H) ; r_vec: (R, H//2, 2) ; etypes: python list (len P-1)."""
    E, P, H = edata.shape
    Hc = H // 2
    assert r_vec.shape[1] == Hc
    assert len(etypes) == P - 1

    # split interleaved (re, im) feature pairs into two lane-dense planes (glue)
    ed = edata.reshape(E, P, Hc, 2).astype(jnp.float32)
    ed_re, ed_im = ed[..., 0], ed[..., 1]
    r_re = r_vec[..., 0].astype(jnp.float32)              # (R, Hc)
    r_im = r_vec[..., 1].astype(jnp.float32)

    vspec = pl.BlockSpec(memory_space=pltpu.MemorySpace.VMEM)
    kernel = functools.partial(_semantic_encoder_kernel, tuple(etypes), P)
    out_re, out_im = pl.pallas_call(
        kernel,
        out_shape=(jax.ShapeDtypeStruct((E, Hc), jnp.float32),
                   jax.ShapeDtypeStruct((E, Hc), jnp.float32)),
        in_specs=[vspec, vspec, vspec, vspec],
        out_specs=(vspec, vspec),
    )(ed_re, ed_im, r_re, r_im)

    # re-interleave to the PyTorch (E, H) layout (glue)
    return jnp.stack([out_re, out_im], axis=-1).reshape(E, H)


# ----------------------------------------------------------------------------
# Pure-JAX reference (mirrors the PyTorch forward) for a correctness check
# ----------------------------------------------------------------------------
def _reference(edata, r_vec, etypes):
    E, P, H = edata.shape
    Hc = H // 2
    ed = edata.reshape(E, P, Hc, 2).astype(jnp.float32)
    norm = jnp.maximum(jnp.linalg.norm(r_vec, axis=2, keepdims=True), 1e-12)
    rn = r_vec / norm
    r2 = jnp.stack([rn, rn], axis=1)
    r2 = r2.at[:, 1, :, 1].multiply(-1.0)
    r2 = r2.reshape(-1, Hc, 2)                            # (2R, Hc, 2)
    f_re = [None] * P
    f_im = [None] * P
    f_re[P - 1] = jnp.ones((Hc,), jnp.float32)
    f_im[P - 1] = jnp.zeros((Hc,), jnp.float32)
    for i in range(P - 2, -1, -1):
        e = etypes[i]
        if e is None:
            f_re[i], f_im[i] = f_re[i + 1], f_im[i + 1]
        else:
            rr, ri = r2[e, :, 0], r2[e, :, 1]
            f_re[i] = f_re[i + 1] * rr - f_im[i + 1] * ri
            f_im[i] = f_re[i + 1] * ri + f_im[i + 1] * rr
    F_re = jnp.stack(f_re)                                # (P, Hc)
    F_im = jnp.stack(f_im)
    rot_re = ed[..., 0] * F_re[None] - ed[..., 1] * F_im[None]
    rot_im = ed[..., 0] * F_im[None] + ed[..., 1] * F_re[None]
    out = jnp.stack([rot_re, rot_im], axis=-1).reshape(E, P, H)
    return jnp.mean(out, axis=1)


# ----------------------------------------------------------------------------
# Deterministic example inputs + run
# ----------------------------------------------------------------------------
if __name__ == "__main__":
    E, P = 8, 6          # num edges (batch), metapath length
    H = 64               # hidden_size (even)
    R = 4                # relation types in r_vec (doubled to 2R inside)
    # static per-position relation indices into the DOUBLED (2R) table;
    # None means "carry the next position's rotation unchanged".
    etypes = [0, 3, None, 5, 2]          # length P - 1

    key = jax.random.PRNGKey(0)
    k1, k2 = jax.random.split(key)
    edata = jax.random.normal(k1, (E, P, H), dtype=jnp.float32)
    r_vec = jax.random.normal(k2, (R, H // 2, 2), dtype=jnp.float32)

    out = semantic_encoder_forward(edata, r_vec, etypes)
    jax.block_until_ready(out)
    assert out.shape == (E, H)

    ref = _reference(edata, r_vec, etypes)
    assert jnp.allclose(out, ref, rtol=1e-4, atol=1e-4), "mismatch vs reference"

    print("KERNEL_OK")
</pallas_src>

<mosaic_0001>
module attributes {stable_mosaic.version = 11 : i64} {
  func.func @_semantic_encoder_kernel(%arg0: memref<8x6x32xf32, #tpu.memory_space<vmem>>, %arg1: memref<8x6x32xf32, #tpu.memory_space<vmem>>, %arg2: memref<4x32xf32, #tpu.memory_space<vmem>>, %arg3: memref<4x32xf32, #tpu.memory_space<vmem>>, %arg4: memref<8x32xf32, #tpu.memory_space<vmem>>, %arg5: memref<8x32xf32, #tpu.memory_space<vmem>>) attributes {dimension_semantics = [], scalar_prefetch = 0 : i64, scratch_operands = 0 : i64, tpu.core_type = #tpu.core_type<tc>} {
    %c0 = arith.constant 0 : index
    %c0_0 = arith.constant 0 : index
    %0 = vector.load %arg2[%c0, %c0_0] : memref<4x32xf32, #tpu.memory_space<vmem>>, vector<4x32xf32>
    %c0_1 = arith.constant 0 : index
    %c0_2 = arith.constant 0 : index
    %1 = vector.load %arg3[%c0_1, %c0_2] : memref<4x32xf32, #tpu.memory_space<vmem>>, vector<4x32xf32>
    %2 = arith.mulf %0, %0 : vector<4x32xf32>
    %3 = arith.mulf %1, %1 : vector<4x32xf32>
    %4 = arith.addf %2, %3 : vector<4x32xf32>
    %5 = math.sqrt %4 : vector<4x32xf32>
    %cst = arith.constant 9.99999996E-13 : f32
    %6 = vector.broadcast %cst : f32 to vector<4x32xf32>
    %7 = arith.maximumf %5, %6 : vector<4x32xf32>
    %8 = arith.divf %0, %7 : vector<4x32xf32>
    %9 = arith.divf %1, %7 : vector<4x32xf32>
    %cst_3 = arith.constant 1.000000e+00 : f32
    %10 = vector.broadcast %cst_3 : f32 to vector<1x32xf32>
    %cst_4 = arith.constant 0.000000e+00 : f32
    %11 = vector.broadcast %cst_4 : f32 to vector<1x32xf32>
    %12 = vector.extract_strided_slice %8 {offsets = [1, 0], sizes = [1, 32], strides = [1, 1]} : vector<4x32xf32> to vector<1x32xf32>
    %13 = vector.extract_strided_slice %9 {offsets = [1, 0], sizes = [1, 32], strides = [1, 1]} : vector<4x32xf32> to vector<1x32xf32>
    %cst_5 = arith.constant 1.000000e+00 : f32
    %14 = vector.broadcast %cst_5 : f32 to vector<1x32xf32>
    %15 = arith.mulf %14, %13 : vector<1x32xf32>
    %16 = arith.mulf %10, %12 : vector<1x32xf32>
    %17 = arith.mulf %11, %15 : vector<1x32xf32>
    %18 = arith.subf %16, %17 : vector<1x32xf32>
    %19 = arith.mulf %10, %15 : vector<1x32xf32>
    %20 = arith.mulf %11, %12 : vector<1x32xf32>
    %21 = arith.addf %19, %20 : vector<1x32xf32>
    %22 = vector.extract_strided_slice %8 {offsets = [2, 0], sizes = [1, 32], strides = [1, 1]} : vector<4x32xf32> to vector<1x32xf32>
    %23 = vector.extract_strided_slice %9 {offsets = [2, 0], sizes = [1, 32], strides = [1, 1]} : vector<4x32xf32> to vector<1x32xf32>
    %cst_6 = arith.constant -1.000000e+00 : f32
    %24 = vector.broadcast %cst_6 : f32 to vector<1x32xf32>
    %25 = arith.mulf %24, %23 : vector<1x32xf32>
    %26 = arith.mulf %18, %22 : vector<1x32xf32>
    %27 = arith.mulf %21, %25 : vector<1x32xf32>
    %28 = arith.subf %26, %27 : vector<1x32xf32>
    %29 = arith.mulf %18, %25 : vector<1x32xf32>
    %30 = arith.mulf %21, %22 : vector<1x32xf32>
    %31 = arith.addf %29, %30 : vector<1x32xf32>
    %32 = vector.extract_strided_slice %8 {offsets = [1, 0], sizes = [1, 32], strides = [1, 1]} : vector<4x32xf32> to vector<1x32xf32>
    %33 = vector.extract_strided_slice %9 {offsets = [1, 0], sizes = [1, 32], strides = [1, 1]} : vector<4x32xf32> to vector<1x32xf32>
    %cst_7 = arith.constant -1.000000e+00 : f32
    %34 = vector.broadcast %cst_7 : f32 to vector<1x32xf32>
    %35 = arith.mulf %34, %33 : vector<1x32xf32>
    %36 = arith.mulf %28, %32 : vector<1x32xf32>
    %37 = arith.mulf %31, %35 : vector<1x32xf32>
    %38 = arith.subf %36, %37 : vector<1x32xf32>
    %39 = arith.mulf %28, %35 : vector<1x32xf32>
    %40 = arith.mulf %31, %32 : vector<1x32xf32>
    %41 = arith.addf %39, %40 : vector<1x32xf32>
    %42 = vector.extract_strided_slice %8 {offsets = [0, 0], sizes = [1, 32], strides = [1, 1]} : vector<4x32xf32> to vector<1x32xf32>
    %43 = vector.extract_strided_slice %9 {offsets = [0, 0], sizes = [1, 32], strides = [1, 1]} : vector<4x32xf32> to vector<1x32xf32>
    %cst_8 = arith.constant 1.000000e+00 : f32
    %44 = vector.broadcast %cst_8 : f32 to vector<1x32xf32>
    %45 = arith.mulf %44, %43 : vector<1x32xf32>
    %46 = arith.mulf %38, %42 : vector<1x32xf32>
    %47 = arith.mulf %41, %45 : vector<1x32xf32>
    %48 = arith.subf %46, %47 : vector<1x32xf32>
    %49 = arith.mulf %38, %45 : vector<1x32xf32>
    %50 = arith.mulf %41, %42 : vector<1x32xf32>
    %51 = arith.addf %49, %50 : vector<1x32xf32>
    %cst_9 = arith.constant 0.000000e+00 : f32
    %52 = vector.broadcast %cst_9 : f32 to vector<8x32xf32>
    %cst_10 = arith.constant 0.000000e+00 : f32
    %53 = vector.broadcast %cst_10 : f32 to vector<8x32xf32>
    %c0_11 = arith.constant 0 : index
    %c0_12 = arith.constant 0 : index
    %c0_13 = arith.constant 0 : index
    %54 = vector.load %arg0[%c0_11, %c0_12, %c0_13] : memref<8x6x32xf32, #tpu.memory_space<vmem>>, vector<8x1x32xf32>
    %55 = vector.shape_cast %54 : vector<8x1x32xf32> to vector<8x32xf32>
    %c0_14 = arith.constant 0 : index
    %c0_15 = arith.constant 0 : index
    %c0_16 = arith.constant 0 : index
    %56 = vector.load %arg1[%c0_14, %c0_15, %c0_16] : memref<8x6x32xf32, #tpu.memory_space<vmem>>, vector<8x1x32xf32>
    %57 = vector.shape_cast %56 : vector<8x1x32xf32> to vector<8x32xf32>
    %58 = vector.broadcast %48 : vector<1x32xf32> to vector<8x32xf32>
    %59 = arith.mulf %55, %58 : vector<8x32xf32>
    %60 = vector.broadcast %51 : vector<1x32xf32> to vector<8x32xf32>
    %61 = arith.mulf %57, %60 : vector<8x32xf32>
    %62 = arith.subf %59, %61 : vector<8x32xf32>
    %63 = arith.addf %52, %62 : vector<8x32xf32>
    %64 = vector.broadcast %51 : vector<1x32xf32> to vector<8x32xf32>
    %65 = arith.mulf %55, %64 : vector<8x32xf32>
    %66 = vector.broadcast %48 : vector<1x32xf32> to vector<8x32xf32>
    %67 = arith.mulf %57, %66 : vector<8x32xf32>
    %68 = arith.addf %65, %67 : vector<8x32xf32>
    %69 = arith.addf %53, %68 : vector<8x32xf32>
    %c0_17 = arith.constant 0 : index
    %c1 = arith.constant 1 : index
    %c0_18 = arith.constant 0 : index
    %70 = vector.load %arg0[%c0_17, %c1, %c0_18] : memref<8x6x32xf32, #tpu.memory_space<vmem>>, vector<8x1x32xf32>
    %71 = vector.shape_cast %70 : vector<8x1x32xf32> to vector<8x32xf32>
    %c0_19 = arith.constant 0 : index
    %c1_20 = arith.constant 1 : index
    %c0_21 = arith.constant 0 : index
    %72 = vector.load %arg1[%c0_19, %c1_20, %c0_21] : memref<8x6x32xf32, #tpu.memory_space<vmem>>, vector<8x1x32xf32>
    %73 = vector.shape_cast %72 : vector<8x1x32xf32> to vector<8x32xf32>
    %74 = vector.broadcast %38 : vector<1x32xf32> to vector<8x32xf32>
    %75 = arith.mulf %71, %74 : vector<8x32xf32>
    %76 = vector.broadcast %41 : vector<1x32xf32> to vector<8x32xf32>
    %77 = arith.mulf %73, %76 : vector<8x32xf32>
    %78 = arith.subf %75, %77 : vector<8x32xf32>
    %79 = arith.addf %63, %78 : vector<8x32xf32>
    %80 = vector.broadcast %41 : vector<1x32xf32> to vector<8x32xf32>
    %81 = arith.mulf %71, %80 : vector<8x32xf32>
    %82 = vector.broadcast %38 : vector<1x32xf32> to vector<8x32xf32>
    %83 = arith.mulf %73, %82 : vector<8x32xf32>
    %84 = arith.addf %81, %83 : vector<8x32xf32>
    %85 = arith.addf %69, %84 : vector<8x32xf32>
    %c0_22 = arith.constant 0 : index
    %c2 = arith.constant 2 : index
    %c0_23 = arith.constant 0 : index
    %86 = vector.load %arg0[%c0_22, %c2, %c0_23] : memref<8x6x32xf32, #tpu.memory_space<vmem>>, vector<8x1x32xf32>
    %87 = vector.shape_cast %86 : vector<8x1x32xf32> to vector<8x32xf32>
    %c0_24 = arith.constant 0 : index
    %c2_25 = arith.constant 2 : index
    %c0_26 = arith.constant 0 : index
    %88 = vector.load %arg1[%c0_24, %c2_25, %c0_26] : memref<8x6x32xf32, #tpu.memory_space<vmem>>, vector<8x1x32xf32>
    %89 = vector.shape_cast %88 : vector<8x1x32xf32> to vector<8x32xf32>
    %90 = vector.broadcast %28 : vector<1x32xf32> to vector<8x32xf32>
    %91 = arith.mulf %87, %90 : vector<8x32xf32>
    %92 = vector.broadcast %31 : vector<1x32xf32> to vector<8x32xf32>
    %93 = arith.mulf %89, %92 : vector<8x32xf32>
    %94 = arith.subf %91, %93 : vector<8x32xf32>
    %95 = arith.addf %79, %94 : vector<8x32xf32>
    %96 = vector.broadcast %31 : vector<1x32xf32> to vector<8x32xf32>
    %97 = arith.mulf %87, %96 : vector<8x32xf32>
    %98 = vector.broadcast %28 : vector<1x32xf32> to vector<8x32xf32>
    %99 = arith.mulf %89, %98 : vector<8x32xf32>
    %100 = arith.addf %97, %99 : vector<8x32xf32>
    %101 = arith.addf %85, %100 : vector<8x32xf32>
    %c0_27 = arith.constant 0 : index
    %c3 = arith.constant 3 : index
    %c0_28 = arith.constant 0 : index
    %102 = vector.load %arg0[%c0_27, %c3, %c0_28] : memref<8x6x32xf32, #tpu.memory_space<vmem>>, vector<8x1x32xf32>
    %103 = vector.shape_cast %102 : vector<8x1x32xf32> to vector<8x32xf32>
    %c0_29 = arith.constant 0 : index
    %c3_30 = arith.constant 3 : index
    %c0_31 = arith.constant 0 : index
    %104 = vector.load %arg1[%c0_29, %c3_30, %c0_31] : memref<8x6x32xf32, #tpu.memory_space<vmem>>, vector<8x1x32xf32>
    %105 = vector.shape_cast %104 : vector<8x1x32xf32> to vector<8x32xf32>
    %106 = vector.broadcast %28 : vector<1x32xf32> to vector<8x32xf32>
    %107 = arith.mulf %103, %106 : vector<8x32xf32>
    %108 = vector.broadcast %31 : vector<1x32xf32> to vector<8x32xf32>
    %109 = arith.mulf %105, %108 : vector<8x32xf32>
    %110 = arith.subf %107, %109 : vector<8x32xf32>
    %111 = arith.addf %95, %110 : vector<8x32xf32>
    %112 = vector.broadcast %31 : vector<1x32xf32> to vector<8x32xf32>
    %113 = arith.mulf %103, %112 : vector<8x32xf32>
    %114 = vector.broadcast %28 : vector<1x32xf32> to vector<8x32xf32>
    %115 = arith.mulf %105, %114 : vector<8x32xf32>
    %116 = arith.addf %113, %115 : vector<8x32xf32>
    %117 = arith.addf %101, %116 : vector<8x32xf32>
    %c0_32 = arith.constant 0 : index
    %c4 = arith.constant 4 : index
    %c0_33 = arith.constant 0 : index
    %118 = vector.load %arg0[%c0_32, %c4, %c0_33] : memref<8x6x32xf32, #tpu.memory_space<vmem>>, vector<8x1x32xf32>
    %119 = vector.shape_cast %118 : vector<8x1x32xf32> to vector<8x32xf32>
    %c0_34 = arith.constant 0 : index
    %c4_35 = arith.constant 4 : index
    %c0_36 = arith.constant 0 : index
    %120 = vector.load %arg1[%c0_34, %c4_35, %c0_36] : memref<8x6x32xf32, #tpu.memory_space<vmem>>, vector<8x1x32xf32>
    %121 = vector.shape_cast %120 : vector<8x1x32xf32> to vector<8x32xf32>
    %122 = vector.broadcast %18 : vector<1x32xf32> to vector<8x32xf32>
    %123 = arith.mulf %119, %122 : vector<8x32xf32>
    %124 = vector.broadcast %21 : vector<1x32xf32> to vector<8x32xf32>
    %125 = arith.mulf %121, %124 : vector<8x32xf32>
    %126 = arith.subf %123, %125 : vector<8x32xf32>
    %127 = arith.addf %111, %126 : vector<8x32xf32>
    %128 = vector.broadcast %21 : vector<1x32xf32> to vector<8x32xf32>
    %129 = arith.mulf %119, %128 : vector<8x32xf32>
    %130 = vector.broadcast %18 : vector<1x32xf32> to vector<8x32xf32>
    %131 = arith.mulf %121, %130 : vector<8x32xf32>
    %132 = arith.addf %129, %131 : vector<8x32xf32>
    %133 = arith.addf %117, %132 : vector<8x32xf32>
    %c0_37 = arith.constant 0 : index
    %c5 = arith.constant 5 : index
    %c0_38 = arith.constant 0 : index
    %134 = vector.load %arg0[%c0_37, %c5, %c0_38] : memref<8x6x32xf32, #tpu.memory_space<vmem>>, vector<8x1x32xf32>
    %135 = vector.shape_cast %134 : vector<8x1x32xf32> to vector<8x32xf32>
    %c0_39 = arith.constant 0 : index
    %c5_40 = arith.constant 5 : index
    %c0_41 = arith.constant 0 : index
    %136 = vector.load %arg1[%c0_39, %c5_40, %c0_41] : memref<8x6x32xf32, #tpu.memory_space<vmem>>, vector<8x1x32xf32>
    %137 = vector.shape_cast %136 : vector<8x1x32xf32> to vector<8x32xf32>
    %138 = arith.addf %127, %135 : vector<8x32xf32>
    %139 = arith.addf %133, %137 : vector<8x32xf32>
    %cst_42 = arith.constant 0.166666672 : f32
    %140 = vector.broadcast %cst_42 : f32 to vector<8x32xf32>
    %141 = arith.mulf %138, %140 : vector<8x32xf32>
    %c0_43 = arith.constant 0 : index
    %c0_44 = arith.constant 0 : index
    %142 = vector.load %arg4[%c0_43, %c0_44] : memref<8x32xf32, #tpu.memory_space<vmem>>, vector<8x32xf32>
    tpu.vector_store %arg4[%c0_43, %c0_44], %141 {strides = array<i32>} : memref<8x32xf32, #tpu.memory_space<vmem>>, vector<8x32xf32>,
    %cst_45 = arith.constant 0.166666672 : f32
    %143 = vector.broadcast %cst_45 : f32 to vector<8x32xf32>
    %144 = arith.mulf %139, %143 : vector<8x32xf32>
    %c0_46 = arith.constant 0 : index
    %c0_47 = arith.constant 0 : index
    %145 = vector.load %arg5[%c0_46, %c0_47] : memref<8x32xf32, #tpu.memory_space<vmem>>, vector<8x32xf32>
    tpu.vector_store %arg5[%c0_46, %c0_47], %144 {strides = array<i32>} : memref<8x32xf32, #tpu.memory_space<vmem>>, vector<8x32xf32>,
    return
  }
}

</mosaic_0001>

<llo_original>
// kernel: tpu_custom_call.1
$region0: #{tpu_custom_call.1}
  #allocation0 [shape = 'u32[]', space=smem, size = 0x4, offset = 0x4, fixed_abs, tag = 'smem constant byte address 0x4 - core index']
  #allocation1 [shape = 'u32[72,128]{1,0:T(1,128)}', space=vmem, size = 0x9000, scoped, tag = 'internal scratch']
  %s0 = inlined_call_operand.vmem [shape: f32[8,6,32], index: 0, kind: input, shape index: {}]
  %s1 = inlined_call_operand.vmem [shape: f32[8,6,32], index: 1, kind: input, shape index: {}]
  %s2 = inlined_call_operand.vmem [shape: f32[4,32], index: 2, kind: input, shape index: {}]
  %s3 = inlined_call_operand.vmem [shape: f32[4,32], index: 3, kind: input, shape index: {}]
  %s4 = inlined_call_operand.hbm [shape: f32[8,32], index: 4, kind: output, shape index: {0}]
  %s5 = inlined_call_operand.hbm [shape: f32[8,32], index: 5, kind: output, shape index: {1}]
  %6 = xla_tuple %s4, %s5
  %s7 = sld [smem:[#allocation0]]
  $region34: #{tpu_custom_call.1} parent=0
    _
  %s9 = ssub.s32 1, %s7
  %s10 = scalar_select 0, %s9, %s7
  $region1: #{tpu_custom_call.1} parent=0
    #allocation2 [shape = 'u8[4096]{0}', space=vmem, size = 0x1000, scoped, tag = 'output window, operand 0, single buffered']
    #allocation3 [shape = 's32[1]{0}', space=sflag, size = 0x4, scoped, tag = 'scoped memory for tpu_custom_call.1']
    #allocation4 [shape = 'u8[4096]{0}', space=vmem, size = 0x1000, scoped, tag = 'output window, operand 1, single buffered']
    #allocation5 [shape = 's32[1]{0}', space=sflag, size = 0x4, scoped, tag = 'scoped memory for tpu_custom_call.1']
    %11 = vsyncpa [#allocation3], 0
    %12 = vsyncpa [#allocation5], 0
    // Predicated region
    $region2: #{tpu_custom_call.1} parent=1 // pred_check
      _
    $region3: #{tpu_custom_call.1} parent=1 // pred_check_branch
      %14 = sbr.rel (0) target = $region5
    $region4: #{tpu_custom_call.1} parent=1 // pred_region
      _
    $region5: #{tpu_custom_call.1} parent=1 // pred_fallthru
      _
    // Predicated region
    $region6: #{tpu_custom_call.1} parent=1 // pred_check
      _
    $region7: #{tpu_custom_call.1} parent=1 // pred_check_branch
      %16 = sbr.rel (0) target = $region9
    $region8: #{tpu_custom_call.1} parent=1 // pred_region
      _
    $region9: #{tpu_custom_call.1} parent=1 // pred_fallthru
      _
    // Predicated region
    $region10: #{tpu_custom_call.1} parent=1 // pred_check
      _
    $region11: #{tpu_custom_call.1} parent=1 // pred_check_branch
      %18 = sbr.rel (0) target = $region13
    $region12: #{tpu_custom_call.1} parent=1 // pred_region
      _
    $region13: #{tpu_custom_call.1} parent=1 // pred_fallthru
      _
    // Predicated region
    $region14: #{tpu_custom_call.1} parent=1 // pred_check
      _
    $region15: #{tpu_custom_call.1} parent=1 // pred_check_branch
      %20 = sbr.rel (0) target = $region17
    $region16: #{tpu_custom_call.1} parent=1 // pred_region
      _
    $region17: #{tpu_custom_call.1} parent=1 // pred_fallthru
      _
    %v21 = vld [vmem:[%s2] sm:$0xf]
    %v22 = vld [vmem:[%s3] sm:$0xf]
    %v23 = vmul.f32 %v21, %v21
    %v24 = vmul.f32 %v22, %v22
    %v25 = vadd.f32 %v23, %v24
    %v26 = vrsqrt.pop %v25
    %v27 = vmul.f32 %v26, %v25
    %v28 = vmul.f32 %v27, %v26
    %v29 = vmul.f32 0.5, %v28
    %v30 = vsub.f32 1.5, %v29
    %v31 = vmul.f32 %v26, %v30
    %v32 = vmul.f32 %v25, %v31
    %vm33 = vcmp.eq.f32.partialorder %v25, inf
    %v34 = vsel %vm33, %v25, %v32
    %vm35 = vcmp.eq.f32.partialorder %v25, 0.0
    %v36 = vand.u32 %v25, 2147483648
    %v37 = vsel %vm35, %v36, %v34
    %v38 = vmax.f32 %v37, 1e-12
    %v39 = vrcp.pop %v38
    %v40 = vmul.f32 %v38, %v39
    %v41 = vsub.f32 1.0, %v40
    %v42 = vmul.f32 %v39, %v41
    %v43 = vadd.f32 %v39, %v42
    %vm44 = vweird.f32 %v38
    %vm45 = vweird.f32 %v39
    %vm46 = vmor %vm44, %vm45
    %v47 = vsel %vm46, %v39, %v43
    %v48 = vand.u32 2147483647, %v38
    %vm49 = vcmp.eq.f32.partialorder %v48, 8.507059e+37
    %v50 = vand.u32 %v38, 2147483648
    %v51 = vor.u32 1.1754944e-38, %v50
    %v52 = vsel %vm49, %v51, %v47
    %v53 = vmul.f32 %v21, %v52
    %v54 = vmul.f32 %v22, %v52
    %v55 = vmul.f32 %v54, 0.0
    %v56 = vsub.f32 %v53, %v55
    %v57 = vmul.f32 %v53, 0.0
    %v58 = vadd.f32 %v54, %v57
    %v59 = vmul.f32 %v54, -1.0
    %v61 = vrot.slane %v53, 1
    %v63 = vmul.f32 %v56, %v61
    %v65 = vrot.slane %v59, 1
    %v67 = vmul.f32 %v58, %v65
    %v68 = vsub.f32 %v63, %v67
    %v69 = vmul.f32 %v56, %v65
    %v70 = vmul.f32 %v58, %v61
    %v71 = vadd.f32 %v69, %v70
    %v72 = vmul.f32 %v68, %v53
    %v73 = vmul.f32 %v71, %v59
    %v74 = vsub.f32 %v72, %v73
    %v75 = vmul.f32 %v68, %v59
    %v76 = vmul.f32 %v71, %v53
    %v77 = vadd.f32 %v75, %v76
    %v78 = vrot.slane %v53, 7
    %v80 = vmul.f32 %v74, %v78
    %v82 = vrot.slane %v54, 7
    %v84 = vmul.f32 %v77, %v82
    %v85 = vsub.f32 %v80, %v84
    %v86 = vmul.f32 %v74, %v82
    %v87 = vmul.f32 %v77, %v78
    %v88 = vadd.f32 %v86, %v87
    %v89 = vld [vmem:[%s0] sm:$0x1]
    %v90 = vld [vmem:[%s0 + $0x8] sm:$0x1]
    %v91 = vld [vmem:[%s0 + $0x10] sm:$0x1]
    %v92 = vld [vmem:[%s0 + $0x18] sm:$0x1]
    %v93 = vld [vmem:[%s0 + $0x20] sm:$0x1]
    %v94 = vld [vmem:[%s0 + $0x28] sm:$0x1]
    %v95 = vld [vmem:[%s0 + $0x30] sm:$0x1]
    %v96 = vld [vmem:[%s0 + $0x38] sm:$0x1]
    %v97 = vld [vmem:[%s1] sm:$0x1]
    %v98 = vld [vmem:[%s1 + $0x8] sm:$0x1]
    %v99 = vld [vmem:[%s1 + $0x10] sm:$0x1]
    %v100 = vld [vmem:[%s1 + $0x18] sm:$0x1]
    %v101 = vld [vmem:[%s1 + $0x20] sm:$0x1]
    %v102 = vld [vmem:[%s1 + $0x28] sm:$0x1]
    %v103 = vld [vmem:[%s1 + $0x30] sm:$0x1]
    %v104 = vld [vmem:[%s1 + $0x38] sm:$0x1]
    %v105 = vperm.slane %v85, 1
    %v106 = vmul.f32 %v89, %v105
    %v107 = vmul.f32 %v90, %v105
    %v108 = vmul.f32 %v91, %v105
    %v109 = vmul.f32 %v92, %v105
    %v110 = vmul.f32 %v93, %v105
    %v111 = vmul.f32 %v94, %v105
    %v112 = vmul.f32 %v95, %v105
    %v113 = vmul.f32 %v96, %v105
    %v114 = vperm.slane %v88, 1
    %v115 = vmul.f32 %v97, %v114
    %v116 = vmul.f32 %v98, %v114
    %v117 = vmul.f32 %v99, %v114
    %v118 = vmul.f32 %v100, %v114
    %v119 = vmul.f32 %v101, %v114
    %v120 = vmul.f32 %v102, %v114
    %v121 = vmul.f32 %v103, %v114
    %v122 = vmul.f32 %v104, %v114
    %v123 = vsub.f32 %v106, %v115
    %v124 = vsub.f32 %v107, %v116
    %v125 = vsub.f32 %v108, %v117
    %v126 = vsub.f32 %v109, %v118
    %v127 = vsub.f32 %v110, %v119
    %v128 = vsub.f32 %v111, %v120
    %v129 = vsub.f32 %v112, %v121
    %v130 = vsub.f32 %v113, %v122
    %v131 = vadd.f32 %v123, 0.0
    %v132 = vadd.f32 %v124, 0.0
    %v133 = vadd.f32 %v125, 0.0
    %v134 = vadd.f32 %v126, 0.0
    %v135 = vadd.f32 %v127, 0.0
    %v136 = vadd.f32 %v128, 0.0
    %v137 = vadd.f32 %v129, 0.0
    %v138 = vadd.f32 %v130, 0.0
    %v139 = vmul.f32 %v89, %v114
    %v140 = vmul.f32 %v90, %v114
    %v141 = vmul.f32 %v91, %v114
    %v142 = vmul.f32 %v92, %v114
    %v143 = vmul.f32 %v93, %v114
    %v144 = vmul.f32 %v94, %v114
    %v145 = vmul.f32 %v95, %v114
    %v146 = vmul.f32 %v96, %v114
    %v147 = vmul.f32 %v97, %v105
    %v148 = vmul.f32 %v98, %v105
    %v149 = vmul.f32 %v99, %v105
    %v150 = vmul.f32 %v100, %v105
    %v151 = vmul.f32 %v101, %v105
    %v152 = vmul.f32 %v102, %v105
    %v153 = vmul.f32 %v103, %v105
    %v154 = vmul.f32 %v104, %v105
    %v155 = vadd.f32 %v139, %v147
    %v156 = vadd.f32 %v140, %v148
    %v157 = vadd.f32 %v141, %v149
    %v158 = vadd.f32 %v142, %v150
    %v159 = vadd.f32 %v143, %v151
    %v160 = vadd.f32 %v144, %v152
    %v161 = vadd.f32 %v145, %v153
    %v162 = vadd.f32 %v146, %v154
    %v163 = vadd.f32 %v155, 0.0
    %v164 = vadd.f32 %v156, 0.0
    %v165 = vadd.f32 %v157, 0.0
    %v166 = vadd.f32 %v158, 0.0
    %v167 = vadd.f32 %v159, 0.0
    %v168 = vadd.f32 %v160, 0.0
    %v169 = vadd.f32 %v161, 0.0
    %v170 = vadd.f32 %v162, 0.0
    %v171 = vld [vmem:[%s0 + $0x1] sm:$0x1]
    %v172 = vld [vmem:[%s0 + $0x9] sm:$0x1]
    %v173 = vld [vmem:[%s0 + $0x11] sm:$0x1]
    %v174 = vld [vmem:[%s0 + $0x19] sm:$0x1]
    %v175 = vld [vmem:[%s0 + $0x21] sm:$0x1]
    %v176 = vld [vmem:[%s0 + $0x29] sm:$0x1]
    %v177 = vld [vmem:[%s0 + $0x31] sm:$0x1]
    %v178 = vld [vmem:[%s0 + $0x39] sm:$0x1]
    %v179 = vld [vmem:[%s1 + $0x1] sm:$0x1]
    %v180 = vld [vmem:[%s1 + $0x9] sm:$0x1]
    %v181 = vld [vmem:[%s1 + $0x11] sm:$0x1]
    %v182 = vld [vmem:[%s1 + $0x19] sm:$0x1]
    %v183 = vld [vmem:[%s1 + $0x21] sm:$0x1]
    %v184 = vld [vmem:[%s1 + $0x29] sm:$0x1]
    %v185 = vld [vmem:[%s1 + $0x31] sm:$0x1]
    %v186 = vld [vmem:[%s1 + $0x39] sm:$0x1]
    %v187 = vperm.slane %v74, 1
    %v188 = vmul.f32 %v171, %v187
    %v189 = vmul.f32 %v172, %v187
    %v190 = vmul.f32 %v173, %v187
    %v191 = vmul.f32 %v174, %v187
    %v192 = vmul.f32 %v175, %v187
    %v193 = vmul.f32 %v176, %v187
    %v194 = vmul.f32 %v177, %v187
    %v195 = vmul.f32 %v178, %v187
    %v196 = vperm.slane %v77, 1
    %v197 = vmul.f32 %v179, %v196
    %v198 = vmul.f32 %v180, %v196
    %v199 = vmul.f32 %v181, %v196
    %v200 = vmul.f32 %v182, %v196
    %v201 = vmul.f32 %v183, %v196
    %v202 = vmul.f32 %v184, %v196
    %v203 = vmul.f32 %v185, %v196
    %v204 = vmul.f32 %v186, %v196
    %v205 = vsub.f32 %v188, %v197
    %v206 = vsub.f32 %v189, %v198
    %v207 = vsub.f32 %v190, %v199
    %v208 = vsub.f32 %v191, %v200
    %v209 = vsub.f32 %v192, %v201
    %v210 = vsub.f32 %v193, %v202
    %v211 = vsub.f32 %v194, %v203
    %v212 = vsub.f32 %v195, %v204
    %v213 = vadd.f32 %v131, %v205
    %v214 = vadd.f32 %v132, %v206
    %v215 = vadd.f32 %v133, %v207
    %v216 = vadd.f32 %v134, %v208
    %v217 = vadd.f32 %v135, %v209
    %v218 = vadd.f32 %v136, %v210
    %v219 = vadd.f32 %v137, %v211
    %v220 = vadd.f32 %v138, %v212
    %v221 = vmul.f32 %v171, %v196
    %v222 = vmul.f32 %v172, %v196
    %v223 = vmul.f32 %v173, %v196
    %v224 = vmul.f32 %v174, %v196
    %v225 = vmul.f32 %v175, %v196
    %v226 = vmul.f32 %v176, %v196
    %v227 = vmul.f32 %v177, %v196
    %v228 = vmul.f32 %v178, %v196
    %v229 = vmul.f32 %v179, %v187
    %v230 = vmul.f32 %v180, %v187
    %v231 = vmul.f32 %v181, %v187
    %v232 = vmul.f32 %v182, %v187
    %v233 = vmul.f32 %v183, %v187
    %v234 = vmul.f32 %v184, %v187
    %v235 = vmul.f32 %v185, %v187
    %v236 = vmul.f32 %v186, %v187
    %v237 = vadd.f32 %v221, %v229
    %v238 = vadd.f32 %v222, %v230
    %v239 = vadd.f32 %v223, %v231
    %v240 = vadd.f32 %v224, %v232
    %v241 = vadd.f32 %v225, %v233
    %v242 = vadd.f32 %v226, %v234
    %v243 = vadd.f32 %v227, %v235
    %v244 = vadd.f32 %v228, %v236
    %v245 = vadd.f32 %v163, %v237
    %v246 = vadd.f32 %v164, %v238
    %v247 = vadd.f32 %v165, %v239
    %v248 = vadd.f32 %v166, %v240
    %v249 = vadd.f32 %v167, %v241
    %v250 = vadd.f32 %v168, %v242
    %v251 = vadd.f32 %v169, %v243
    %v252 = vadd.f32 %v170, %v244
    %v253 = vld [vmem:[%s0 + $0x2] sm:$0x1]
    %v254 = vld [vmem:[%s0 + $0xa] sm:$0x1]
    %v255 = vld [vmem:[%s0 + $0x12] sm:$0x1]
    %v256 = vld [vmem:[%s0 + $0x1a] sm:$0x1]
    %v257 = vld [vmem:[%s0 + $0x22] sm:$0x1]
    %v258 = vld [vmem:[%s0 + $0x2a] sm:$0x1]
    %v259 = vld [vmem:[%s0 + $0x32] sm:$0x1]
    %v260 = vld [vmem:[%s0 + $0x3a] sm:$0x1]
    %v261 = vld [vmem:[%s1 + $0x2] sm:$0x1]
    %v262 = vld [vmem:[%s1 + $0xa] sm:$0x1]
    %v263 = vld [vmem:[%s1 + $0x12] sm:$0x1]
    %v264 = vld [vmem:[%s1 + $0x1a] sm:$0x1]
    %v265 = vld [vmem:[%s1 + $0x22] sm:$0x1]
    %v266 = vld [vmem:[%s1 + $0x2a] sm:$0x1]
    %v267 = vld [vmem:[%s1 + $0x32] sm:$0x1]
    %v268 = vld [vmem:[%s1 + $0x3a] sm:$0x1]
    %v269 = vperm.slane %v68, 1
    %v270 = vmul.f32 %v253, %v269
    %v271 = vmul.f32 %v254, %v269
    %v272 = vmul.f32 %v255, %v269
    %v273 = vmul.f32 %v256, %v269
    %v274 = vmul.f32 %v257, %v269
    %v275 = vmul.f32 %v258, %v269
    %v276 = vmul.f32 %v259, %v269
    %v277 = vmul.f32 %v260, %v269
    %v278 = vperm.slane %v71, 1
    %v279 = vmul.f32 %v261, %v278
    %v280 = vmul.f32 %v262, %v278
    %v281 = vmul.f32 %v263, %v278
    %v282 = vmul.f32 %v264, %v278
    %v283 = vmul.f32 %v265, %v278
    %v284 = vmul.f32 %v266, %v278
    %v285 = vmul.f32 %v267, %v278
    %v286 = vmul.f32 %v268, %v278
    %v287 = vsub.f32 %v270, %v279
    %v288 = vsub.f32 %v271, %v280
    %v289 = vsub.f32 %v272, %v281
    %v290 = vsub.f32 %v273, %v282
    %v291 = vsub.f32 %v274, %v283
    %v292 = vsub.f32 %v275, %v284
    %v293 = vsub.f32 %v276, %v285
    %v294 = vsub.f32 %v277, %v286
    %v295 = vadd.f32 %v213, %v287
    %v296 = vadd.f32 %v214, %v288
    %v297 = vadd.f32 %v215, %v289
    %v298 = vadd.f32 %v216, %v290
    %v299 = vadd.f32 %v217, %v291
    %v300 = vadd.f32 %v218, %v292
    %v301 = vadd.f32 %v219, %v293
    %v302 = vadd.f32 %v220, %v294
    %v303 = vmul.f32 %v253, %v278
    %v304 = vmul.f32 %v254, %v278
    %v305 = vmul.f32 %v255, %v278
    %v306 = vmul.f32 %v256, %v278
    %v307 = vmul.f32 %v257, %v278
    %v308 = vmul.f32 %v258, %v278
    %v309 = vmul.f32 %v259, %v278
    %v310 = vmul.f32 %v260, %v278
    %v311 = vmul.f32 %v261, %v269
    %v312 = vmul.f32 %v262, %v269
    %v313 = vmul.f32 %v263, %v269
    %v314 = vmul.f32 %v264, %v269
    %v315 = vmul.f32 %v265, %v269
    %v316 = vmul.f32 %v266, %v269
    %v317 = vmul.f32 %v267, %v269
    %v318 = vmul.f32 %v268, %v269
    %v319 = vadd.f32 %v303, %v311
    %v320 = vadd.f32 %v304, %v312
    %v321 = vadd.f32 %v305, %v313
    %v322 = vadd.f32 %v306, %v314
    %v323 = vadd.f32 %v307, %v315
    %v324 = vadd.f32 %v308, %v316
    %v325 = vadd.f32 %v309, %v317
    %v326 = vadd.f32 %v310, %v318
    %v327 = vadd.f32 %v245, %v319
    %v328 = vadd.f32 %v246, %v320
    %v329 = vadd.f32 %v247, %v321
    %v330 = vadd.f32 %v248, %v322
    %v331 = vadd.f32 %v249, %v323
    %v332 = vadd.f32 %v250, %v324
    %v333 = vadd.f32 %v251, %v325
    %v334 = vadd.f32 %v252, %v326
    %v335 = vld [vmem:[%s0 + $0x3] sm:$0x1]
    %v336 = vld [vmem:[%s0 + $0xb] sm:$0x1]
    %v337 = vld [vmem:[%s0 + $0x13] sm:$0x1]
    %v338 = vld [vmem:[%s0 + $0x1b] sm:$0x1]
    %v339 = vld [vmem:[%s0 + $0x23] sm:$0x1]
    %v340 = vld [vmem:[%s0 + $0x2b] sm:$0x1]
    %v341 = vld [vmem:[%s0 + $0x33] sm:$0x1]
    %v342 = vld [vmem:[%s0 + $0x3b] sm:$0x1]
    %v343 = vld [vmem:[%s1 + $0x3] sm:$0x1]
    %v344 = vld [vmem:[%s1 + $0xb] sm:$0x1]
    %v345 = vld [vmem:[%s1 + $0x13] sm:$0x1]
    %v346 = vld [vmem:[%s1 + $0x1b] sm:$0x1]
    %v347 = vld [vmem:[%s1 + $0x23] sm:$0x1]
    %v348 = vld [vmem:[%s1 + $0x2b] sm:$0x1]
    %v349 = vld [vmem:[%s1 + $0x33] sm:$0x1]
    %v350 = vld [vmem:[%s1 + $0x3b] sm:$0x1]
    %v351 = vmul.f32 %v335, %v269
    %v352 = vmul.f32 %v336, %v269
    %v353 = vmul.f32 %v337, %v269
    %v354 = vmul.f32 %v338, %v269
    %v355 = vmul.f32 %v339, %v269
    %v356 = vmul.f32 %v340, %v269
    %v357 = vmul.f32 %v341, %v269
    %v358 = vmul.f32 %v342, %v269
    %v359 = vmul.f32 %v343, %v278
    %v360 = vmul.f32 %v344, %v278
    %v361 = vmul.f32 %v345, %v278
    %v362 = vmul.f32 %v346, %v278
    %v363 = vmul.f32 %v347, %v278
    %v364 = vmul.f32 %v348, %v278
    %v365 = vmul.f32 %v349, %v278
    %v366 = vmul.f32 %v350, %v278
    %v367 = vsub.f32 %v351, %v359
    %v368 = vsub.f32 %v352, %v360
    %v369 = vsub.f32 %v353, %v361
    %v370 = vsub.f32 %v354, %v362
    %v371 = vsub.f32 %v355, %v363
    %v372 = vsub.f32 %v356, %v364
    %v373 = vsub.f32 %v357, %v365
    %v374 = vsub.f32 %v358, %v366
    %v375 = vadd.f32 %v295, %v367
    %v376 = vadd.f32 %v296, %v368
    %v377 = vadd.f32 %v297, %v369
    %v378 = vadd.f32 %v298, %v370
    %v379 = vadd.f32 %v299, %v371
    %v380 = vadd.f32 %v300, %v372
    %v381 = vadd.f32 %v301, %v373
    %v382 = vadd.f32 %v302, %v374
    %v383 = vmul.f32 %v335, %v278
    %v384 = vmul.f32 %v336, %v278
    %v385 = vmul.f32 %v337, %v278
    %v386 = vmul.f32 %v338, %v278
    %v387 = vmul.f32 %v339, %v278
    %v388 = vmul.f32 %v340, %v278
    %v389 = vmul.f32 %v341, %v278
    %v390 = vmul.f32 %v342, %v278
    %v391 = vmul.f32 %v343, %v269
    %v392 = vmul.f32 %v344, %v269
    %v393 = vmul.f32 %v345, %v269
    %v394 = vmul.f32 %v346, %v269
    %v395 = vmul.f32 %v347, %v269
    %v396 = vmul.f32 %v348, %v269
    %v397 = vmul.f32 %v349, %v269
    %v398 = vmul.f32 %v350, %v269
    %v399 = vadd.f32 %v383, %v391
    %v400 = vadd.f32 %v384, %v392
    %v401 = vadd.f32 %v385, %v393
    %v402 = vadd.f32 %v386, %v394
    %v403 = vadd.f32 %v387, %v395
    %v404 = vadd.f32 %v388, %v396
    %v405 = vadd.f32 %v389, %v397
    %v406 = vadd.f32 %v390, %v398
    %v407 = vadd.f32 %v327, %v399
    %v408 = vadd.f32 %v328, %v400
    %v409 = vadd.f32 %v329, %v401
    %v410 = vadd.f32 %v330, %v402
    %v411 = vadd.f32 %v331, %v403
    %v412 = vadd.f32 %v332, %v404
    %v413 = vadd.f32 %v333, %v405
    %v414 = vadd.f32 %v334, %v406
    %v415 = vld [vmem:[%s0 + $0x4] sm:$0x1]
    %v416 = vld [vmem:[%s0 + $0xc] sm:$0x1]
    %v417 = vld [vmem:[%s0 + $0x14] sm:$0x1]
    %v418 = vld [vmem:[%s0 + $0x1c] sm:$0x1]
    %v419 = vld [vmem:[%s0 + $0x24] sm:$0x1]
    %v420 = vld [vmem:[%s0 + $0x2c] sm:$0x1]
    %v421 = vld [vmem:[%s0 + $0x34] sm:$0x1]
    %v422 = vld [vmem:[%s0 + $0x3c] sm:$0x1]
    %v423 = vld [vmem:[%s1 + $0x4] sm:$0x1]
    %v424 = vld [vmem:[%s1 + $0xc] sm:$0x1]
    %v425 = vld [vmem:[%s1 + $0x14] sm:$0x1]
    %v426 = vld [vmem:[%s1 + $0x1c] sm:$0x1]
    %v427 = vld [vmem:[%s1 + $0x24] sm:$0x1]
    %v428 = vld [vmem:[%s1 + $0x2c] sm:$0x1]
    %v429 = vld [vmem:[%s1 + $0x34] sm:$0x1]
    %v430 = vld [vmem:[%s1 + $0x3c] sm:$0x1]
    %v431 = vperm.slane %v56, 1
    %v432 = vmul.f32 %v415, %v431
    %v433 = vmul.f32 %v416, %v431
    %v434 = vmul.f32 %v417, %v431
    %v435 = vmul.f32 %v418, %v431
    %v436 = vmul.f32 %v419, %v431
    %v437 = vmul.f32 %v420, %v431
    %v438 = vmul.f32 %v421, %v431
    %v439 = vmul.f32 %v422, %v431
    %v440 = vperm.slane %v58, 1
    %v441 = vmul.f32 %v423, %v440
    %v442 = vmul.f32 %v424, %v440
    %v443 = vmul.f32 %v425, %v440
    %v444 = vmul.f32 %v426, %v440
    %v445 = vmul.f32 %v427, %v440
    %v446 = vmul.f32 %v428, %v440
    %v447 = vmul.f32 %v429, %v440
    %v448 = vmul.f32 %v430, %v440
    %v449 = vsub.f32 %v432, %v441
    %v450 = vsub.f32 %v433, %v442
    %v451 = vsub.f32 %v434, %v443
    %v452 = vsub.f32 %v435, %v444
    %v453 = vsub.f32 %v436, %v445
    %v454 = vsub.f32 %v437, %v446
    %v455 = vsub.f32 %v438, %v447
    %v456 = vsub.f32 %v439, %v448
    %v457 = vadd.f32 %v375, %v449
    %v458 = vadd.f32 %v376, %v450
    %v459 = vadd.f32 %v377, %v451
    %v460 = vadd.f32 %v378, %v452
    %v461 = vadd.f32 %v379, %v453
    %v462 = vadd.f32 %v380, %v454
    %v463 = vadd.f32 %v381, %v455
    %v464 = vadd.f32 %v382, %v456
    %v465 = vmul.f32 %v415, %v440
    %v466 = vmul.f32 %v416, %v440
    %v467 = vmul.f32 %v417, %v440
    %v468 = vmul.f32 %v418, %v440
    %v469 = vmul.f32 %v419, %v440
    %v470 = vmul.f32 %v420, %v440
    %v471 = vmul.f32 %v421, %v440
    %v472 = vmul.f32 %v422, %v440
    %v473 = vmul.f32 %v423, %v431
    %v474 = vmul.f32 %v424, %v431
    %v475 = vmul.f32 %v425, %v431
    %v476 = vmul.f32 %v426, %v431
    %v477 = vmul.f32 %v427, %v431
    %v478 = vmul.f32 %v428, %v431
    %v479 = vmul.f32 %v429, %v431
    %v480 = vmul.f32 %v430, %v431
    %v481 = vadd.f32 %v465, %v473
    %v482 = vadd.f32 %v466, %v474
    %v483 = vadd.f32 %v467, %v475
    %v484 = vadd.f32 %v468, %v476
    %v485 = vadd.f32 %v469, %v477
    %v486 = vadd.f32 %v470, %v478
    %v487 = vadd.f32 %v471, %v479
    %v488 = vadd.f32 %v472, %v480
    %v489 = vadd.f32 %v407, %v481
    %v490 = vadd.f32 %v408, %v482
    %v491 = vadd.f32 %v409, %v483
    %v492 = vadd.f32 %v410, %v484
    %v493 = vadd.f32 %v411, %v485
    %v494 = vadd.f32 %v412, %v486
    %v495 = vadd.f32 %v413, %v487
    %v496 = vadd.f32 %v414, %v488
    %v497 = vld [vmem:[%s0 + $0x5] sm:$0x1]
    %v498 = vld [vmem:[%s0 + $0xd] sm:$0x1]
    %v499 = vld [vmem:[%s0 + $0x15] sm:$0x1]
    %v500 = vld [vmem:[%s0 + $0x1d] sm:$0x1]
    %v501 = vld [vmem:[%s0 + $0x25] sm:$0x1]
    %v502 = vld [vmem:[%s0 + $0x2d] sm:$0x1]
    %v503 = vld [vmem:[%s0 + $0x35] sm:$0x1]
    %v504 = vld [vmem:[%s0 + $0x3d] sm:$0x1]
    %v505 = vld [vmem:[%s1 + $0x5] sm:$0x1]
    %v506 = vld [vmem:[%s1 + $0xd] sm:$0x1]
    %v507 = vld [vmem:[%s1 + $0x15] sm:$0x1]
    %v508 = vld [vmem:[%s1 + $0x1d] sm:$0x1]
    %v509 = vld [vmem:[%s1 + $0x25] sm:$0x1]
    %v510 = vld [vmem:[%s1 + $0x2d] sm:$0x1]
    %v511 = vld [vmem:[%s1 + $0x35] sm:$0x1]
    %v512 = vld [vmem:[%s1 + $0x3d] sm:$0x1]
    %v513 = vadd.f32 %v457, %v497
    %v514 = vadd.f32 %v458, %v498
    %v515 = vadd.f32 %v459, %v499
    %v516 = vadd.f32 %v460, %v500
    %v517 = vadd.f32 %v461, %v501
    %v518 = vadd.f32 %v462, %v502
    %v519 = vadd.f32 %v463, %v503
    %v520 = vadd.f32 %v464, %v504
    %v521 = vadd.f32 %v489, %v505
    %v522 = vadd.f32 %v490, %v506
    %v523 = vadd.f32 %v491, %v507
    %v524 = vadd.f32 %v492, %v508
    %v525 = vadd.f32 %v493, %v509
    %v526 = vadd.f32 %v494, %v510
    %v527 = vadd.f32 %v495, %v511
    %v528 = vadd.f32 %v496, %v512
    %v529 = vmul.f32 %v513, 0.16666667
    %v530 = vmul.f32 %v514, 0.16666667
    %v531 = vmul.f32 %v515, 0.16666667
    %v532 = vmul.f32 %v516, 0.16666667
    %v533 = vmul.f32 %v517, 0.16666667
    %v534 = vmul.f32 %v518, 0.16666667
    %v535 = vmul.f32 %v519, 0.16666667
    %v536 = vmul.f32 %v520, 0.16666667
    %v545 = vrot.slane %v530, 7
    %vm546 = vcmask 1041409
    %v547 = vsel %vm546, %v545, %v529
    %v548 = vrot.slane %v531, 6
    %vm549 = vcmask 1042434
    %v550 = vsel %vm549, %v548, %v547
    %v551 = vrot.slane %v532, 5
    %vm552 = vcmask 1043459
    %v553 = vsel %vm552, %v551, %v550
    %v554 = vrot.slane %v533, 4
    %vm555 = vcmask 1044484
    %v556 = vsel %vm555, %v554, %v553
    %v557 = vrot.slane %v534, 3
    %vm558 = vcmask 1045509
    %v559 = vsel %vm558, %v557, %v556
    %v560 = vrot.slane %v535, 2
    %vm561 = vcmask 1046534
    %v562 = vsel %vm561, %v560, %v559
    %v563 = vrot.slane %v536, 1
    %vm564 = vcmask 1047559
    %v565 = vsel %vm564, %v563, %v562
    %vm567 = vcmask 261120
    %568 = vst.msk [vmem:[#allocation2] sm:$0xff] %vm567, %v565
    %v569 = vmul.f32 %v521, 0.16666667
    %v570 = vmul.f32 %v522, 0.16666667
    %v571 = vmul.f32 %v523, 0.16666667
    %v572 = vmul.f32 %v524, 0.16666667
    %v573 = vmul.f32 %v525, 0.16666667
    %v574 = vmul.f32 %v526, 0.16666667
    %v575 = vmul.f32 %v527, 0.16666667
    %v576 = vmul.f32 %v528, 0.16666667
    %v585 = vrot.slane %v570, 7
    %v586 = vsel %vm546, %v585, %v569
    %v587 = vrot.slane %v571, 6
    %v588 = vsel %vm549, %v587, %v586
    %v589 = vrot.slane %v572, 5
    %v590 = vsel %vm552, %v589, %v588
    %v591 = vrot.slane %v573, 4
    %v592 = vsel %vm555, %v591, %v590
    %v593 = vrot.slane %v574, 3
    %v594 = vsel %vm558, %v593, %v592
    %v595 = vrot.slane %v575, 2
    %v596 = vsel %vm561, %v595, %v594
    %v597 = vrot.slane %v576, 1
    %v598 = vsel %vm564, %v597, %v596
    %600 = vst.msk [vmem:[#allocation4] sm:$0xff] %vm567, %v598
    // Predicated region
    $region18: #{tpu_custom_call.1} parent=1 // pred_check
      _
    $region19: #{tpu_custom_call.1} parent=1 // pred_check_branch
      %602 = sbr.rel (0) target = $region21
    $region20: #{tpu_custom_call.1} parent=1 // pred_region
      %604 = vsyncadd [#allocation3], 0
      %s606 = sshll.u32 [#allocation2], 4
      %s607 = int_to_ptr.vmem [resolvable:$true] %s606
      %s608 = sshll.u32 %s4, 4
      %s609 = int_to_ptr.hbm [resolvable:$true] %s608
      %611 = dma.vmem_to_hbm [thread:$0]  %s607, 128, %s609, [#allocation3]
    $region21: #{tpu_custom_call.1} parent=1 // pred_fallthru
      _
    // Predicated region
    $region22: #{tpu_custom_call.1} parent=1 // pred_check
      _
    $region23: #{tpu_custom_call.1} parent=1 // pred_check_branch
      %613 = sbr.rel (0) target = $region25
    $region24: #{tpu_custom_call.1} parent=1 // pred_region
      %615 = vsyncadd [#allocation5], 0
      %s617 = sshll.u32 [#allocation4], 4
      %s618 = int_to_ptr.vmem [resolvable:$true] %s617
      %s619 = sshll.u32 %s5, 4
      %s620 = int_to_ptr.hbm [resolvable:$true] %s619
      %622 = dma.vmem_to_hbm [thread:$0]  %s618, 128, %s620, [#allocation5]
    $region25: #{tpu_custom_call.1} parent=1 // pred_fallthru
      _
    // Predicated region
    $region26: #{tpu_custom_call.1} parent=1 // pred_check
      _
    $region27: #{tpu_custom_call.1} parent=1 // pred_check_branch
      %624 = sbr.rel (0) target = $region29
    $region28: #{tpu_custom_call.1} parent=1 // pred_region
      %626 = dma.done [#allocation3], 128
    $region29: #{tpu_custom_call.1} parent=1 // pred_fallthru
      _
    // Predicated region
    $region30: #{tpu_custom_call.1} parent=1 // pred_check
      _
    $region31: #{tpu_custom_call.1} parent=1 // pred_check_branch
      %628 = sbr.rel (0) target = $region33
    $region32: #{tpu_custom_call.1} parent=1 // pred_region
      %630 = dma.done [#allocation5], 128
    $region33: #{tpu_custom_call.1} parent=1 // pred_fallthru
      _
    %631 = vsyncpa [#allocation3], 1
    %632 = vsyncpa [#allocation5], 1

</llo_original>
